<compile_context>
chip_gen: v5e
topology: v5e:2x2
jax: 0.10.0
libtpu: 0.0.40
codegen_flags: <defaults>
</compile_context>

<pallas_src>
import math

import jax
import jax.numpy as jnp
from jax.experimental import pallas as pl
from jax.experimental.pallas import tpu as pltpu


def _rescale_kernel(w_ref, x_ref, o_ref):
    # w_ref: (1, tile_d) tile; x_ref / o_ref: (tile_m, tile_d) tiles.
    # VPU broadcast-multiply down the sublane (row) axis.
    o_ref[...] = x_ref[...] * w_ref[...]


_LANE = 128
_MIB = 1024 * 1024
# Below this many bytes, skip Pallas: launch + per-step overhead dominates and
# XLA's fused broadcast-multiply can avoid the extra HBM round trip entirely.
_TINY_BYTES = 4 * _MIB
# Max folded row width for the lane-dense repack.
_MAX_REPACK_WIDTH = 65536


def _sublane_multiple(dtype) -> int:
    """Native sublane packing granularity for a dtype (8 f32 / 16 bf16 / 32 int8)."""
    itemsize = jnp.dtype(dtype).itemsize
    if itemsize >= 4:
        return 8
    if itemsize == 2:
        return 16
    return 32


def _chip_profile():
    """Return (tile_budget_bytes, vmem_limit_bytes, tensorcores_per_chip)."""
    try:
        info = pltpu.get_tpu_info()
        vmem = int(getattr(info, "vmem_capacity_bytes", 0) or 0)
    except Exception:  # pragma: no cover - defensive, API shape may vary
        vmem = 0
    if vmem and vmem <= 96 * _MIB:
        # v7x-like: 64 MiB VMEM per TC, 2 TCs/chip. 2(in)+2(out) x 8 MiB = 32
        # MiB of tile buffers; 44 MiB scoped limit leaves headroom.
        return 8 * _MIB, 44 * _MIB, 2
    if vmem:
        # v5e / v6e: 128 MiB physical VMEM, single TC. Bigger tiles are free.
        return 16 * _MIB, 80 * _MIB, 1
    # Unknown chip: conservative values that are safe everywhere.
    return 8 * _MIB, 44 * _MIB, 1


def rescale(x: jax.Array, weight: jax.Array, *, force_pallas: bool = False) -> jax.Array:
    """Per-channel rescale: weight (1, frame_dim) * x (..., frame_dim).

    Output dtype follows PyTorch promotion rules: result_type(weight, x).
    """
    assert weight.ndim == 2 and weight.shape[0] == 1
    frame_dim = weight.shape[1]
    assert x.shape[-1] == frame_dim, "last dim of x must equal frame_dim"

    orig_shape = x.shape
    out_dtype = jnp.result_type(weight.dtype, x.dtype)
    itemsize = jnp.dtype(out_dtype).itemsize

    # Tiny problems: skip Pallas entirely (identical semantics, no launch cost).
    if (not force_pallas) and x.size * itemsize < _TINY_BYTES:
        return weight.astype(out_dtype) * x.astype(out_dtype)

    w = weight.astype(out_dtype)
    x2d = x.astype(out_dtype).reshape(-1, frame_dim)  # (M, D)
    m_orig, d_orig = x2d.shape
    m, d = m_orig, d_orig

    tile_budget, vmem_limit, num_tc = _chip_profile()
    sublane = _sublane_multiple(out_dtype)

    # --- Lane-dense repack ----------------------------------------------------
    # Fold k consecutive rows into one so the lane dim is a multiple of 128,
    # turning masked partial stores into full unmasked lane-dense vst's.
    repacked = False
    if d % _LANE != 0:
        k = _LANE // math.gcd(d, _LANE)
        if k * d <= _MAX_REPACK_WIDTH:
            pad_rows = (-m) % k
            if pad_rows:
                x2d = jnp.pad(x2d, ((0, pad_rows), (0, 0)))
            x2d = x2d.reshape((m + pad_rows) // k, k * d)
            w = jnp.tile(w, (1, k))
            m, d = x2d.shape
            repacked = True

    # --- Tile-size selection ----------------------------------------------------
    row_bytes = d * itemsize

    # Prefer full-row tiles (one contiguous HBM DMA per block). Only tile the
    # lane dim when even a minimal sublane-high slab exceeds the budget.
    if d % _LANE == 0 and sublane * row_bytes > tile_budget:
        tile_d = _LANE
        for cand in (16384, 8192, 4096, 2048, 1024, 512, 256, 128):
            if d % cand == 0 and sublane * cand * itemsize <= tile_budget:
                tile_d = cand
                break
    else:
        tile_d = d

    # Largest row tile that keeps one buffer under budget, rounded to the
    # dtype's native sublane multiple.
    tile_m = tile_budget // max(1, tile_d * itemsize)
    tile_m = max(sublane, (tile_m // sublane) * sublane)
    if tile_m >= m:
        tile_m = m  # full extent is always a legal block shape
        # Only split a single-tile problem on multi-TC chips (v7x), 2-way, and
        # only if each half stays >= ~2 MiB (otherwise pure per-step overhead).
        if (
            num_tc >= 2
            and m >= 2 * sublane
            and (m * d * itemsize) // 2 >= 2 * _MIB
        ):
            half = ((m // 2) // sublane) * sublane
            if half >= sublane:
                tile_m = half

    # Lane tiles outermost, row tiles innermost: the weight block index then
    # only depends on the outer axis, so it stays resident in VMEM across the
    # whole inner row loop (no per-step re-DMA of the weight).
    grid = (pl.cdiv(d, tile_d), pl.cdiv(m, tile_m))

    out = pl.pallas_call(
        _rescale_kernel,
        out_shape=jax.ShapeDtypeStruct((m, d), out_dtype),
        grid_spec=pltpu.PrefetchScalarGridSpec(
            num_scalar_prefetch=0,
            grid=grid,
            in_specs=[
                # weight: one (1, tile_d) block per lane tile; constant across
                # the inner row axis -> kept resident in VMEM.
                pl.BlockSpec((1, tile_d), lambda j, i: (0, j)),
                # x: 2D-tiled (rows x lanes).
                pl.BlockSpec((tile_m, tile_d), lambda j, i: (i, j)),
            ],
            out_specs=pl.BlockSpec((tile_m, tile_d), lambda j, i: (i, j)),
        ),
        compiler_params=pltpu.CompilerParams(
            dimension_semantics=("parallel", "parallel"),
            vmem_limit_bytes=vmem_limit,
        ),
        # TODO(synk): if an xprof trace shows exposed DMA at tile boundaries on
        # v7x, add pipeline_mode=pl.Buffered(3) on the x BlockSpec and re-check
        # VMEM fit (3 in + 2 out buffers).
    )(w, x2d)

    if repacked:
        out = out.reshape(-1, d_orig)[:m_orig]

    return out.reshape(orig_shape)


if __name__ == "__main__":
    # Small shapes consistent with the module: batch=2, seq=8, frame_dim=32.
    batch, seq, frame_dim = 2, 8, 32

    key = jax.random.PRNGKey(0)
    kx, kw = jax.random.split(key)

    x = jax.random.normal(kx, (batch, seq, frame_dim), dtype=jnp.float32)

    # PyTorch __init__ uses torch.ones(1, frame_dim); perturb deterministically
    # so the broadcast is actually exercised.
    weight = jnp.ones((1, frame_dim), dtype=jnp.float32) \
        + 0.01 * jax.random.normal(kw, (1, frame_dim), dtype=jnp.float32)

    # force_pallas=True so this tiny demo actually exercises the kernel path
    # (the wrapper would otherwise use the fused-XLA fast path for small sizes).
    y = rescale(x, weight, force_pallas=True)
    y = jax.block_until_ready(y)

    # Correctness check against plain-JAX broadcast semantics (== PyTorch's).
    y_ref = weight * x
    assert y.shape == x.shape
    assert y.dtype == y_ref.dtype
    assert jnp.allclose(y, y_ref, atol=1e-6, rtol=1e-6)

    print("KERNEL_OK")
</pallas_src>

<mosaic_0001>
module attributes {stable_mosaic.version = 11 : i64} {
  func.func @_rescale_kernel(%arg0: i32, %arg1: i32, %arg2: memref<1x128xf32, #tpu.memory_space<vmem>>, %arg3: memref<4x128xf32, #tpu.memory_space<vmem>>, %arg4: memref<4x128xf32, #tpu.memory_space<vmem>>) attributes {dimension_semantics = [#tpu.dimension_semantics<parallel>, #tpu.dimension_semantics<parallel>], iteration_bounds = array<i64: 1, 1>, scalar_prefetch = 0 : i64, scratch_operands = 0 : i64, tpu.core_type = #tpu.core_type<tc>, window_params = [{transform_indices = @transform_0, window_bounds = array<i64: 1, 128>}, {transform_indices = @transform_1, window_bounds = array<i64: 4, 128>}, {transform_indices = @transform_2, window_bounds = array<i64: 4, 128>}]} {
    %c0 = arith.constant 0 : index
    %c0_0 = arith.constant 0 : index
    %0 = vector.load %arg3[%c0, %c0_0] : memref<4x128xf32, #tpu.memory_space<vmem>>, vector<4x128xf32>
    %c0_1 = arith.constant 0 : index
    %c0_2 = arith.constant 0 : index
    %1 = vector.load %arg2[%c0_1, %c0_2] : memref<1x128xf32, #tpu.memory_space<vmem>>, vector<1x128xf32>
    %2 = vector.broadcast %1 : vector<1x128xf32> to vector<4x128xf32>
    %3 = arith.mulf %0, %2 : vector<4x128xf32>
    %c0_3 = arith.constant 0 : index
    %c0_4 = arith.constant 0 : index
    %4 = vector.load %arg4[%c0_3, %c0_4] : memref<4x128xf32, #tpu.memory_space<vmem>>, vector<4x128xf32>
    tpu.vector_store %arg4[%c0_3, %c0_4], %3 {strides = array<i32>} : memref<4x128xf32, #tpu.memory_space<vmem>>, vector<4x128xf32>,
    return
  }
  func.func @transform_0(%arg0: i32, %arg1: i32) -> (i32, i32) {
    %c0_i32 = arith.constant 0 : i32
    %c0_i32_0 = arith.constant 0 : i32
    return %c0_i32, %arg0 : i32, i32
  }
  func.func @transform_1(%arg0: i32, %arg1: i32) -> (i32, i32) {
    %c0_i32 = arith.constant 0 : i32
    return %arg1, %arg0 : i32, i32
  }
  func.func @transform_2(%arg0: i32, %arg1: i32) -> (i32, i32) {
    %c0_i32 = arith.constant 0 : i32
    return %arg1, %arg0 : i32, i32
  }
}

</mosaic_0001>

<llo_original>
// kernel: tpu_custom_call.1
$region0: #{tpu_custom_call.1}
  #allocation0 [shape = 'u32[]', space=smem, size = 0x4, offset = 0x4, fixed_abs, tag = 'smem constant byte address 0x4 - core index']
  #allocation1 [shape = 'u32[72,128]{1,0:T(1,128)}', space=vmem, size = 0x9000, scoped, tag = 'internal scratch']
  %s0 = inlined_call_operand.hbm [shape: f32[1,128], index: 0, kind: input, shape index: {}]
  %s1 = inlined_call_operand.hbm [shape: f32[4,128], index: 1, kind: input, shape index: {}]
  %s2 = inlined_call_operand.hbm [shape: f32[4,128], index: 2, kind: output, shape index: {}]
  %s3 = sld [smem:[#allocation0]]
  $region26: #{tpu_custom_call.1} parent=0
    _
  %s5 = ssub.s32 1, %s3
  %s6 = scalar_select 0, %s5, %s3
  $region1: #{tpu_custom_call.1} parent=0
    #allocation2 [shape = 'u8[512]{0}', space=vmem, size = 0x400, scoped, tag = 'input window, operand 0, single buffered']
    #allocation3 [shape = 's32[1]{0}', space=sflag, size = 0x4, scoped, tag = 'scoped memory for tpu_custom_call.1']
    #allocation4 [shape = 's32[1]{0}', space=sflag, size = 0x4, scoped, tag = 'scoped memory for tpu_custom_call.1']
    #allocation5 [shape = 'u8[2048]{0}', space=vmem, size = 0x800, scoped, tag = 'input window, operand 1, single buffered']
    #allocation6 [shape = 's32[1]{0}', space=sflag, size = 0x4, scoped, tag = 'scoped memory for tpu_custom_call.1']
    #allocation7 [shape = 'u8[2048]{0}', space=vmem, size = 0x800, scoped, tag = 'output window, operand 0, single buffered']
    %7 = vsyncpa [#allocation3], 0
    %8 = vsyncpa [#allocation6], 0
    %9 = vsyncpa [#allocation4], 0
    // Predicated region
    $region2: #{tpu_custom_call.1} parent=1 // pred_check
      _
    $region3: #{tpu_custom_call.1} parent=1 // pred_check_branch
      %11 = sbr.rel (0) target = $region5
    $region4: #{tpu_custom_call.1} parent=1 // pred_region
      %13 = vsyncadd [#allocation3], 0
      %s15 = sshll.u32 %s0, 4
      %s16 = int_to_ptr.hbm [resolvable:$true] %s15
      %s17 = sshll.u32 [#allocation2], 4
      %s18 = int_to_ptr.vmem [resolvable:$true] %s17
      %20 = dma.hbm_to_vmem [thread:$0]  %s16, 16, %s18, [#allocation3]
    $region5: #{tpu_custom_call.1} parent=1 // pred_fallthru
      _
    // Predicated region
    $region6: #{tpu_custom_call.1} parent=1 // pred_check
      _
    $region7: #{tpu_custom_call.1} parent=1 // pred_check_branch
      %22 = sbr.rel (0) target = $region9
    $region8: #{tpu_custom_call.1} parent=1 // pred_region
      %24 = vsyncadd [#allocation6], 0
      %s26 = sshll.u32 %s1, 4
      %s27 = int_to_ptr.hbm [resolvable:$true] %s26
      %s28 = sshll.u32 [#allocation5], 4
      %s29 = int_to_ptr.vmem [resolvable:$true] %s28
      %31 = dma.hbm_to_vmem [thread:$0]  %s27, 64, %s29, [#allocation6]
    $region9: #{tpu_custom_call.1} parent=1 // pred_fallthru
      _
    // Predicated region
    $region10: #{tpu_custom_call.1} parent=1 // pred_check
      _
    $region11: #{tpu_custom_call.1} parent=1 // pred_check_branch
      %33 = sbr.rel (0) target = $region13
    $region12: #{tpu_custom_call.1} parent=1 // pred_region
      %35 = dma.done [#allocation3], 16
    $region13: #{tpu_custom_call.1} parent=1 // pred_fallthru
      _
    // Predicated region
    $region14: #{tpu_custom_call.1} parent=1 // pred_check
      _
    $region15: #{tpu_custom_call.1} parent=1 // pred_check_branch
      %37 = sbr.rel (0) target = $region17
    $region16: #{tpu_custom_call.1} parent=1 // pred_region
      %39 = dma.done [#allocation6], 64
    $region17: #{tpu_custom_call.1} parent=1 // pred_fallthru
      _
    %v40 = vld [vmem:[#allocation5] sm:$0xf]
    %v41 = vld [vmem:[#allocation2] sm:$0x1]
    %v43 = vperm.slane %v41, 0
    %v45 = vmul.f32 %v40, %v43
    %46 = vst [vmem:[#allocation7] sm:$0xf] %v45
    // Predicated region
    $region18: #{tpu_custom_call.1} parent=1 // pred_check
      _
    $region19: #{tpu_custom_call.1} parent=1 // pred_check_branch
      %48 = sbr.rel (0) target = $region21
    $region20: #{tpu_custom_call.1} parent=1 // pred_region
      %50 = vsyncadd [#allocation4], 0
      %s52 = sshll.u32 [#allocation7], 4
      %s53 = int_to_ptr.vmem [resolvable:$true] %s52
      %s54 = sshll.u32 %s2, 4
      %s55 = int_to_ptr.hbm [resolvable:$true] %s54
      %57 = dma.vmem_to_hbm [thread:$0]  %s53, 64, %s55, [#allocation4]
    $region21: #{tpu_custom_call.1} parent=1 // pred_fallthru
      _
    // Predicated region
    $region22: #{tpu_custom_call.1} parent=1 // pred_check
      _
    $region23: #{tpu_custom_call.1} parent=1 // pred_check_branch
      %59 = sbr.rel (0) target = $region25
    $region24: #{tpu_custom_call.1} parent=1 // pred_region
      %61 = dma.done [#allocation4], 64
    $region25: #{tpu_custom_call.1} parent=1 // pred_fallthru
      _
    %62 = vsyncpa [#allocation3], 1
    %63 = vsyncpa [#allocation6], 1
    %64 = vsyncpa [#allocation4], 1

</llo_original>
